<compile_context>
chip_gen: v7x
topology: tpu7x:2x2x1
jax: 0.10.0
libtpu: 0.0.40
codegen_flags: <defaults>
</compile_context>

<pallas_src>
import functools

import jax
import jax.numpy as jnp
from jax import lax
from jax.experimental import pallas as pl
from jax.experimental.pallas import tpu as pltpu
import numpy as np


_FLAT_BLOCK_LIMIT = 2 << 20   # per-block f32 bytes before switching to the H-tiled path
_TARGET_IO_BYTES = 1 << 20    # ~1 MiB I/O blocks: pipelining sweet spot on all generations


def _vmem_capacity_bytes():
    cap = 64 * 1024 * 1024  # conservative default (v7x has 64 MiB per TensorCore)
    try:
        info_cap = getattr(pltpu.get_tpu_info(), "vmem_capacity_bytes", None)
        if info_cap:
            cap = int(info_cap)
    except Exception:
        pass
    return cap


@functools.lru_cache(maxsize=32)
def _edge_masks(h, w):
    """(4, h*w) f32 0/1 masks [left-ok, right-ok, top-ok, bottom-ok] per flat pixel."""
    p = np.arange(h * w)
    c = p % w
    m = np.stack([c >= 1, c <= w - 2, p >= w, p < (h - 1) * w]).astype(np.float32)
    return jnp.asarray(m)


def _pick_th(h, w):
    """Largest multiple-of-8 divisor of h whose f32 row-tile stays ~<= 1 MiB."""
    best = 8
    for th in range(8, h, 8):
        if h % th == 0 and th * w * 4 <= _TARGET_IO_BYTES:
            best = th
    return best


# --------------------------------------------------------------------------------------
# Flat path: whole planes, lane axis = flattened H*W (lane-dense stores for any W).
# --------------------------------------------------------------------------------------
def _sobel_flat_kernel(m_ref, x_ref, o_ref, *, w, hw):
    x = x_ref[...].astype(jnp.float32)
    shp = x.shape
    # Resident (4, hw) edge masks; broadcast each once and reuse (no CSE for broadcasts).
    m_l = jnp.broadcast_to(m_ref[0:1, :], shp)
    m_r = jnp.broadcast_to(m_ref[1:2, :], shp)

    # Column pass: 1-D [1,0,-1] (dx) and [1,2,1] (sx) filters along the flat lane axis.
    if w > 1:
        xl = pltpu.roll(x, 1, axis=1) * m_l            # x[.., p-1], zeroed at col 0
        xr = pltpu.roll(x, hw - 1, axis=1) * m_r       # x[.., p+1], zeroed at col W-1
    else:
        xl = jnp.zeros_like(x)
        xr = jnp.zeros_like(x)
    dx = xl - xr
    sx = xl + xr + 2.0 * x

    # Row pass: vertical neighbours are W lanes away in the flat layout.
    if hw > w:
        m_t = jnp.broadcast_to(m_ref[2:3, :], shp)
        m_b = jnp.broadcast_to(m_ref[3:4, :], shp)
        dx_up = pltpu.roll(dx, w, axis=1) * m_t
        dx_dn = pltpu.roll(dx, hw - w, axis=1) * m_b
        sx_up = pltpu.roll(sx, w, axis=1) * m_t
        sx_dn = pltpu.roll(sx, hw - w, axis=1) * m_b
        gx = dx_up + 2.0 * dx + dx_dn   # cross-corr with [[1,0,-1],[2,0,-2],[1,0,-1]]
        gy = sx_up - sx_dn              # cross-corr with its transpose
    else:                               # single-row image: only the middle kernel row hits
        gx = 2.0 * dx
        gy = jnp.zeros_like(dx)
    o_ref[...] = (jnp.abs(gx) + jnp.abs(gy)).astype(o_ref.dtype)


# --------------------------------------------------------------------------------------
# H-tiled path: (nc, h, w) layout, TH-row tiles with a 1-row halo taken from two thin
# 8-row slab views of the same input (clamped index_maps; edges zeroed by tile index).
# --------------------------------------------------------------------------------------
def _sobel_tiled_kernel(x_ref, up_ref, dn_ref, o_ref, *, w):
    f32 = jnp.float32
    x = x_ref[...].astype(f32)                        # (1, TH, W) body rows
    th = x.shape[1]

    t = pl.program_id(1)
    nt = pl.num_programs(1)
    row_above = up_ref[:, 7:8, :].astype(f32) * (t > 0).astype(f32)
    row_below = dn_ref[:, 0:1, :].astype(f32) * (t < nt - 1).astype(f32)

    col = lax.broadcasted_iota(jnp.int32, (1, 1, w), 2)   # tiny (W lanes), no modulo
    m_l = (col >= 1).astype(f32)
    m_r = (col <= w - 2).astype(f32)

    def col_pass(a):
        if w > 1:
            al = pltpu.roll(a, 1, axis=2) * m_l
            ar = pltpu.roll(a, w - 1, axis=2) * m_r
        else:
            al = jnp.zeros_like(a)
            ar = jnp.zeros_like(a)
        return al - ar, al + ar + 2.0 * a

    dx, sx = col_pass(x)
    dxa, sxa = col_pass(row_above)
    dxb, sxb = col_pass(row_below)

    ri = lax.broadcasted_iota(jnp.int32, (1, th, 1), 1)
    first = ri == 0
    last = ri == th - 1
    dx_up = jnp.where(first, dxa, pltpu.roll(dx, 1, axis=1))
    sx_up = jnp.where(first, sxa, pltpu.roll(sx, 1, axis=1))
    dx_dn = jnp.where(last, dxb, pltpu.roll(dx, th - 1, axis=1))
    sx_dn = jnp.where(last, sxb, pltpu.roll(sx, th - 1, axis=1))

    gx = dx_up + 2.0 * dx + dx_dn
    gy = sx_up - sx_dn
    o_ref[...] = (jnp.abs(gx) + jnp.abs(gy)).astype(o_ref.dtype)


# --------------------------------------------------------------------------------------
# Wrapper
# --------------------------------------------------------------------------------------
def sobelxy_forward(x, *, h_tile=None):
    """x: (N, C, H, W). Depthwise 3x3 Sobel (zero pad); returns |sobel_x| + |sobel_y|."""
    n, c, h, w = x.shape
    nc = n * c
    hw = h * w
    itemsize = jnp.dtype(x.dtype).itemsize
    cap = _vmem_capacity_bytes()

    # Channel-group block for the flat path: divisor of nc that is a multiple of 8 (the
    # sublane rule) or nc itself; ~1 MiB of I/O per block (dtype-aware); prefer an even
    # number of grid steps >= 2 so dual-TensorCore parts get balanced work.
    cands = sorted({d for d in range(8, nc + 1, 8) if nc % d == 0} | {nc})
    fitting = [d for d in cands if d * hw * itemsize <= _TARGET_IO_BYTES] or cands[:1]
    even = [d for d in fitting if (nc // d) >= 2 and (nc // d) % 2 == 0]
    ge2 = [d for d in fitting if (nc // d) >= 2]
    tg = max(even) if even else (max(ge2) if ge2 else max(fitting))

    tiled_ok = (h % 8 == 0) and (h >= 16)
    if h_tile is None:
        use_tiled = tiled_ok and (cands[0] * hw * 4 > _FLAT_BLOCK_LIMIT)
        th = _pick_th(h, w) if use_tiled else None
    else:
        if h_tile % 8 != 0 or h % h_tile != 0:
            raise ValueError("h_tile must be a multiple of 8 that divides H")
        use_tiled, th = True, h_tile

    flops = 22 * nc * hw
    bytes_accessed = 2 * nc * hw * itemsize + 16 * hw
    cost = pl.CostEstimate(flops=flops, transcendentals=0, bytes_accessed=bytes_accessed)

    if not use_tiled:
        # TODO(synk): huge planes whose H is not a multiple of 8 still fall back to one
        # whole-plane block here (would need ragged H-tiling to fix).
        x2 = x.reshape(nc, hw)                       # free reshape, no transpose
        masks = _edge_masks(h, w)
        needed = 4 * tg * hw * itemsize + 10 * tg * hw * 4 + 8 * 16 * hw + (8 << 20)
        vmem_limit = int(min(int(cap * 0.9), max(32 << 20, needed)))
        out = pl.pallas_call(
            functools.partial(_sobel_flat_kernel, w=w, hw=hw),
            out_shape=jax.ShapeDtypeStruct((nc, hw), x.dtype),
            grid=(nc // tg,),
            in_specs=[pl.BlockSpec((4, hw), lambda i: (0, 0)),    # resident edge masks
                      pl.BlockSpec((tg, hw), lambda i: (i, 0))],
            out_specs=pl.BlockSpec((tg, hw), lambda i: (i, 0)),
            compiler_params=pltpu.CompilerParams(
                dimension_semantics=("parallel",),
                vmem_limit_bytes=vmem_limit),
            cost_estimate=cost,
        )(masks, x2)
        return out.reshape(n, c, h, w)

    # H-tiled path.
    x3 = x.reshape(nc, h, w)                          # free reshape, no transpose
    sl = th // 8
    nslab = h // 8
    needed = 4 * th * w * itemsize + 12 * th * w * 4 + (8 << 20)
    vmem_limit = int(min(int(cap * 0.9), max(32 << 20, needed)))
    out = pl.pallas_call(
        functools.partial(_sobel_tiled_kernel, w=w),
        out_shape=jax.ShapeDtypeStruct((nc, h, w), x.dtype),
        grid=(nc, h // th),
        in_specs=[
            pl.BlockSpec((1, th, w), lambda ci, ti: (ci, ti, 0)),
            pl.BlockSpec((1, 8, w),
                         lambda ci, ti: (ci, jnp.maximum(ti * sl - 1, 0), 0)),
            pl.BlockSpec((1, 8, w),
                         lambda ci, ti: (ci, jnp.minimum(ti * sl + sl, nslab - 1), 0)),
        ],
        out_specs=pl.BlockSpec((1, th, w), lambda ci, ti: (ci, ti, 0)),
        compiler_params=pltpu.CompilerParams(
            dimension_semantics=("parallel", "parallel"),
            vmem_limit_bytes=vmem_limit),
        cost_estimate=cost,
    )(x3, x3, x3)
    return out.reshape(n, c, h, w)


# --------------------------------------------------------------------------------------
# Reference + tests
# --------------------------------------------------------------------------------------
def _reference(x, wx, wy):
    """Pure-jnp reference: depthwise 3x3 cross-correlation with zero padding, abs-sum."""
    N, C, H, W = x.shape
    xf = x.astype(jnp.float32)
    xpad = jnp.pad(xf, ((0, 0), (0, 0), (1, 1), (1, 1)))
    outx = jnp.zeros_like(xf)
    outy = jnp.zeros_like(xf)
    for ki in range(3):
        for kj in range(3):
            patch = xpad[:, :, ki:ki + H, kj:kj + W]
            outx = outx + wx[ki, kj] * patch
            outy = outy + wy[ki, kj] * patch
    return jnp.abs(outx) + jnp.abs(outy)


if __name__ == "__main__":
    # Fixed Sobel filters, exactly as in the PyTorch module's __init__.
    sobel_filter = np.array([[1, 0, -1], [2, 0, -2], [1, 0, -1]], dtype=np.float32)
    wx = sobel_filter        # conv_x weight (shared across channels, groups=channels)
    wy = sobel_filter.T      # conv_y weight

    key = jax.random.PRNGKey(0)

    # Main shape from the module spec: batch=2, channels=4, 16x16 images (flat path).
    x = jax.random.normal(key, (2, 4, 16, 16), dtype=jnp.float32)
    out = jax.block_until_ready(sobelxy_forward(x))
    assert out.shape == (2, 4, 16, 16)
    np.testing.assert_allclose(np.asarray(out), np.asarray(_reference(x, wx, wy)),
                               rtol=1e-5, atol=1e-5)

    # Flat path variants: nc not a multiple of 8 / wide rows, and a 2-step grid.
    for i, shape in enumerate([(1, 3, 8, 128), (2, 8, 16, 16)]):
        xi = jax.random.normal(jax.random.fold_in(key, i + 1), shape, dtype=jnp.float32)
        oi = jax.block_until_ready(sobelxy_forward(xi))
        np.testing.assert_allclose(np.asarray(oi), np.asarray(_reference(xi, wx, wy)),
                                   rtol=1e-5, atol=1e-5)

    # H-tiled (1-row halo) path, forced on a small shape so edge and interior tiles run.
    xt = jax.random.normal(jax.random.fold_in(key, 7), (1, 2, 32, 128), dtype=jnp.float32)
    ot = jax.block_until_ready(sobelxy_forward(xt, h_tile=8))
    np.testing.assert_allclose(np.asarray(ot), np.asarray(_reference(xt, wx, wy)),
                               rtol=1e-5, atol=1e-5)

    # bf16 I/O path (f32 compute, bf16 load/store); tolerance covers the output rounding.
    xb = jax.random.normal(jax.random.fold_in(key, 9), (2, 8, 16, 16), dtype=jnp.bfloat16)
    ob = jax.block_until_ready(sobelxy_forward(xb))
    np.testing.assert_allclose(np.asarray(ob.astype(jnp.float32)),
                               np.asarray(_reference(xb, wx, wy)),
                               rtol=2e-2, atol=2e-2)

    print("KERNEL_OK")
</pallas_src>

<mosaic_0001>
module attributes {stable_mosaic.version = 11 : i64} {
  func.func @_sobel_flat_kernel(%arg0: i32, %arg1: memref<4x256xf32, #tpu.memory_space<vmem>>, %arg2: memref<8x256xf32, #tpu.memory_space<vmem>>, %arg3: memref<8x256xf32, #tpu.memory_space<vmem>>) attributes {dimension_semantics = [#tpu.dimension_semantics<parallel>], iteration_bounds = array<i64: 1>, scalar_prefetch = 0 : i64, scratch_operands = 0 : i64, tpu.core_type = #tpu.core_type<tc>, window_params = [{pipeline_mode = #tpu.pipeline_mode<synchronous>, transform_indices = @transform_0, window_bounds = array<i64: 4, 256>}, {transform_indices = @transform_1, window_bounds = array<i64: 8, 256>}, {transform_indices = @transform_2, window_bounds = array<i64: 8, 256>}]} {
    %c0 = arith.constant 0 : index
    %c0_0 = arith.constant 0 : index
    %0 = vector.load %arg2[%c0, %c0_0] : memref<8x256xf32, #tpu.memory_space<vmem>>, vector<8x256xf32>
    %c0_1 = arith.constant 0 : index
    %c0_2 = arith.constant 0 : index
    %1 = vector.load %arg1[%c0_1, %c0_2] : memref<4x256xf32, #tpu.memory_space<vmem>>, vector<1x256xf32>
    %2 = vector.shape_cast %1 : vector<1x256xf32> to vector<1x256xf32>
    %3 = vector.broadcast %2 : vector<1x256xf32> to vector<8x256xf32>
    %c1 = arith.constant 1 : index
    %c0_3 = arith.constant 0 : index
    %4 = vector.load %arg1[%c1, %c0_3] : memref<4x256xf32, #tpu.memory_space<vmem>>, vector<1x256xf32>
    %5 = vector.shape_cast %4 : vector<1x256xf32> to vector<1x256xf32>
    %6 = vector.broadcast %5 : vector<1x256xf32> to vector<8x256xf32>
    %c1_i32 = arith.constant 1 : i32
    %7 = tpu.dynamic_rotate %0 by %c1_i32 dim 1 : vector<8x256xf32>, i32 -> vector<8x256xf32>
    %8 = arith.mulf %7, %3 : vector<8x256xf32>
    %c255_i32 = arith.constant 255 : i32
    %9 = tpu.dynamic_rotate %0 by %c255_i32 dim 1 : vector<8x256xf32>, i32 -> vector<8x256xf32>
    %10 = arith.mulf %9, %6 : vector<8x256xf32>
    %11 = arith.subf %8, %10 : vector<8x256xf32>
    %12 = arith.addf %8, %10 : vector<8x256xf32>
    %cst = arith.constant 2.000000e+00 : f32
    %13 = vector.broadcast %cst : f32 to vector<8x256xf32>
    %14 = arith.mulf %13, %0 : vector<8x256xf32>
    %15 = arith.addf %12, %14 : vector<8x256xf32>
    %c2 = arith.constant 2 : index
    %c0_4 = arith.constant 0 : index
    %16 = vector.load %arg1[%c2, %c0_4] : memref<4x256xf32, #tpu.memory_space<vmem>>, vector<1x256xf32>
    %17 = vector.shape_cast %16 : vector<1x256xf32> to vector<1x256xf32>
    %18 = vector.broadcast %17 : vector<1x256xf32> to vector<8x256xf32>
    %c3 = arith.constant 3 : index
    %c0_5 = arith.constant 0 : index
    %19 = vector.load %arg1[%c3, %c0_5] : memref<4x256xf32, #tpu.memory_space<vmem>>, vector<1x256xf32>
    %20 = vector.shape_cast %19 : vector<1x256xf32> to vector<1x256xf32>
    %21 = vector.broadcast %20 : vector<1x256xf32> to vector<8x256xf32>
    %c16_i32 = arith.constant 16 : i32
    %22 = tpu.dynamic_rotate %11 by %c16_i32 dim 1 : vector<8x256xf32>, i32 -> vector<8x256xf32>
    %23 = arith.mulf %22, %18 : vector<8x256xf32>
    %c240_i32 = arith.constant 240 : i32
    %24 = tpu.dynamic_rotate %11 by %c240_i32 dim 1 : vector<8x256xf32>, i32 -> vector<8x256xf32>
    %25 = arith.mulf %24, %21 : vector<8x256xf32>
    %c16_i32_6 = arith.constant 16 : i32
    %26 = tpu.dynamic_rotate %15 by %c16_i32_6 dim 1 : vector<8x256xf32>, i32 -> vector<8x256xf32>
    %27 = arith.mulf %26, %18 : vector<8x256xf32>
    %c240_i32_7 = arith.constant 240 : i32
    %28 = tpu.dynamic_rotate %15 by %c240_i32_7 dim 1 : vector<8x256xf32>, i32 -> vector<8x256xf32>
    %29 = arith.mulf %28, %21 : vector<8x256xf32>
    %cst_8 = arith.constant 2.000000e+00 : f32
    %30 = vector.broadcast %cst_8 : f32 to vector<8x256xf32>
    %31 = arith.mulf %30, %11 : vector<8x256xf32>
    %32 = arith.addf %23, %31 : vector<8x256xf32>
    %33 = arith.addf %32, %25 : vector<8x256xf32>
    %34 = arith.subf %27, %29 : vector<8x256xf32>
    %35 = math.absf %33 : vector<8x256xf32>
    %36 = math.absf %34 : vector<8x256xf32>
    %37 = arith.addf %35, %36 : vector<8x256xf32>
    %c0_9 = arith.constant 0 : index
    %c0_10 = arith.constant 0 : index
    %38 = vector.load %arg3[%c0_9, %c0_10] : memref<8x256xf32, #tpu.memory_space<vmem>>, vector<8x256xf32>
    tpu.vector_store %arg3[%c0_9, %c0_10], %37 {strides = array<i32>} : memref<8x256xf32, #tpu.memory_space<vmem>>, vector<8x256xf32>,
    return
  }
  func.func @transform_0(%arg0: i32) -> (i32, i32) {
    %c0_i32 = arith.constant 0 : i32
    %c0_i32_0 = arith.constant 0 : i32
    %c0_i32_1 = arith.constant 0 : i32
    return %c0_i32, %c0_i32_0 : i32, i32
  }
  func.func @transform_1(%arg0: i32) -> (i32, i32) {
    %c0_i32 = arith.constant 0 : i32
    %c0_i32_0 = arith.constant 0 : i32
    return %arg0, %c0_i32 : i32, i32
  }
  func.func @transform_2(%arg0: i32) -> (i32, i32) {
    %c0_i32 = arith.constant 0 : i32
    %c0_i32_0 = arith.constant 0 : i32
    return %arg0, %c0_i32 : i32, i32
  }
}

</mosaic_0001>

<llo_original>
// kernel: tpu_custom_call.1
$region0: #{tpu_custom_call.1}
  #allocation0 [shape = 'u32[]', space=smem, size = 0x4, offset = 0x4, fixed_abs, tag = 'smem constant byte address 0x4 - core index']
  #allocation1 [shape = 'u32[144,128]{1,0:T(1,128)}', space=vmem, size = 0x12000, scoped, tag = 'internal scratch']
  %s0 = inlined_call_operand.hbm [shape: f32[4,256], index: 0, kind: input, shape index: {}]
  %s1 = inlined_call_operand.hbm [shape: f32[8,256], index: 1, kind: input, shape index: {}]
  %s2 = inlined_call_operand.hbm [shape: f32[8,256], index: 2, kind: output, shape index: {}]
  %s3 = sld [smem:[#allocation0]]
  $region26: #{tpu_custom_call.1} parent=0
    _
  %s5 = ssub.s32 1, %s3
  %s6 = scalar_select 0, %s5, %s3
  $region1: #{tpu_custom_call.1} parent=0
    #allocation2 [shape = 'u8[4096]{0}', space=vmem, size = 0x1000, scoped, tag = 'input window, operand 0, single buffered']
    #allocation3 [shape = 's32[1]{0}', space=sflag, size = 0x4, scoped, tag = 'scoped memory for tpu_custom_call.1']
    #allocation4 [shape = 's32[1]{0}', space=sflag, size = 0x4, scoped, tag = 'scoped memory for tpu_custom_call.1']
    #allocation5 [shape = 'u8[8192]{0}', space=vmem, size = 0x2000, scoped, tag = 'input window, operand 1, single buffered']
    #allocation6 [shape = 's32[1]{0}', space=sflag, size = 0x4, scoped, tag = 'scoped memory for tpu_custom_call.1']
    #allocation7 [shape = 'u8[8192]{0}', space=vmem, size = 0x2000, scoped, tag = 'output window, operand 0, single buffered']
    %7 = vsyncpa [#allocation3], 0
    %8 = vsyncpa [#allocation6], 0
    %9 = vsyncpa [#allocation4], 0
    // Predicated region
    $region2: #{tpu_custom_call.1} parent=1 // pred_check
      _
    $region3: #{tpu_custom_call.1} parent=1 // pred_check_branch
      %11 = sbr.rel (0) target = $region5
    $region4: #{tpu_custom_call.1} parent=1 // pred_region
      %s13 = ssub.s32 128, 128
      %14 = vsyncadd [#allocation3], %s13
      %s16 = sshll.u32 [#allocation2], 4
      %s17 = int_to_ptr.vmem [resolvable:$true] %s16
      %19 = dma.hbm_to_vmem [thread:$0]  %s0, 128, %s17, [#allocation3]
    $region5: #{tpu_custom_call.1} parent=1 // pred_fallthru
      _
    // Predicated region
    $region6: #{tpu_custom_call.1} parent=1 // pred_check
      _
    $region7: #{tpu_custom_call.1} parent=1 // pred_check_branch
      %21 = sbr.rel (0) target = $region9
    $region8: #{tpu_custom_call.1} parent=1 // pred_region
      %s23 = ssub.s32 256, 256
      %24 = vsyncadd [#allocation6], %s23
      %s26 = sshll.u32 [#allocation5], 4
      %s27 = int_to_ptr.vmem [resolvable:$true] %s26
      %29 = dma.hbm_to_vmem [thread:$0]  %s1, 256, %s27, [#allocation6]
    $region9: #{tpu_custom_call.1} parent=1 // pred_fallthru
      _
    // Predicated region
    $region10: #{tpu_custom_call.1} parent=1 // pred_check
      _
    $region11: #{tpu_custom_call.1} parent=1 // pred_check_branch
      %31 = sbr.rel (0) target = $region13
    $region12: #{tpu_custom_call.1} parent=1 // pred_region
      %32 = dma.done [#allocation3], 128
    $region13: #{tpu_custom_call.1} parent=1 // pred_fallthru
      _
    // Predicated region
    $region14: #{tpu_custom_call.1} parent=1 // pred_check
      _
    $region15: #{tpu_custom_call.1} parent=1 // pred_check_branch
      %34 = sbr.rel (0) target = $region17
    $region16: #{tpu_custom_call.1} parent=1 // pred_region
      %35 = dma.done [#allocation6], 256
    $region17: #{tpu_custom_call.1} parent=1 // pred_fallthru
      _
    %v36 = vld [vmem:[#allocation5] sm:$0xff]
    %v37 = vld [vmem:[#allocation5 + $0x8] sm:$0xff]
    %v38 = vld [vmem:[#allocation2] ss:$4 sm:$0x3]
    %v40 = vlaneseq
    %v41 = vshrl.u32 %v40, 7
    %v42 = vsub.s32 0, %v41
    %v43 = vrot.slane %v38, %v42
    %v44 = vlaneseq
    %v45 = vshrl.u32 %v44, 7
    %v46 = vsub.s32 1, %v45
    %v47 = vrot.slane %v38, %v46
    %s50 = scalar_lea.vmem [#allocation2], 1
    %v51 = vld [vmem:[%s50] ss:$4 sm:$0x3]
    %v53 = vlaneseq
    %v54 = vshrl.u32 %v53, 7
    %v55 = vsub.s32 0, %v54
    %v56 = vrot.slane %v51, %v55
    %v57 = vlaneseq
    %v58 = vshrl.u32 %v57, 7
    %v59 = vsub.s32 1, %v58
    %v60 = vrot.slane %v51, %v59
    %63 = vrot.lane.b32.xlu0 %v36, 1
    %v64 = vpop.permute.xlu0 %63
    %65 = vrot.lane.b32.xlu0 %v37, 1
    %v66 = vpop.permute.xlu0 %65
    %v67 = vlaneseq
    %v68 = vand.u32 %v67, 127
    %vm69 = vcmp.lt.s32.totalorder %v68, 1
    %v70 = vsel %vm69, %v64, %v66
    %v71 = vsel %vm69, %v66, %v64
    %v72 = vmul.f32 %v71, %v43
    %v73 = vmul.f32 %v70, %v47
    %74 = vrot.lane.b32.xlu0 %v36, 127
    %v75 = vpop.permute.xlu0 %74
    %76 = vrot.lane.b32.xlu0 %v37, 127
    %v77 = vpop.permute.xlu0 %76
    %vm78 = vcmp.lt.s32.totalorder %v68, 127
    %v79 = vsel %vm78, %v75, %v77
    %v80 = vsel %vm78, %v77, %v75
    %v81 = vmul.f32 %v79, %v56
    %v82 = vmul.f32 %v80, %v60
    %v83 = vsub.f32 %v72, %v81
    %v84 = vsub.f32 %v73, %v82
    %v85 = vadd.f32 %v72, %v81
    %v86 = vadd.f32 %v73, %v82
    %v87 = vmul.f32 %v36, 2.0
    %v88 = vmul.f32 %v37, 2.0
    %v89 = vadd.f32 %v85, %v87
    %v90 = vadd.f32 %v86, %v88
    %s91 = scalar_lea.vmem [#allocation2], 2
    %v92 = vld [vmem:[%s91] ss:$4 sm:$0x3]
    %v94 = vlaneseq
    %v95 = vshrl.u32 %v94, 7
    %v96 = vsub.s32 0, %v95
    %v97 = vrot.slane %v92, %v96
    %v98 = vlaneseq
    %v99 = vshrl.u32 %v98, 7
    %v100 = vsub.s32 1, %v99
    %v101 = vrot.slane %v92, %v100
    %s104 = scalar_lea.vmem [#allocation2], 3
    %v105 = vld [vmem:[%s104] ss:$4 sm:$0x3]
    %v107 = vlaneseq
    %v108 = vshrl.u32 %v107, 7
    %v109 = vsub.s32 0, %v108
    %v110 = vrot.slane %v105, %v109
    %v111 = vlaneseq
    %v112 = vshrl.u32 %v111, 7
    %v113 = vsub.s32 1, %v112
    %v114 = vrot.slane %v105, %v113
    %117 = vrot.lane.b32.xlu0 %v83, 16
    %v118 = vpop.permute.xlu0 %117
    %119 = vrot.lane.b32.xlu0 %v84, 16
    %v120 = vpop.permute.xlu0 %119
    %vm121 = vcmp.lt.s32.totalorder %v68, 16
    %v122 = vsel %vm121, %v118, %v120
    %v123 = vsel %vm121, %v120, %v118
    %v124 = vmul.f32 %v123, %v97
    %v125 = vmul.f32 %v122, %v101
    %126 = vrot.lane.b32.xlu0 %v83, 112
    %v127 = vpop.permute.xlu0 %126
    %128 = vrot.lane.b32.xlu0 %v84, 112
    %v129 = vpop.permute.xlu0 %128
    %vm130 = vcmp.lt.s32.totalorder %v68, 112
    %v131 = vsel %vm130, %v127, %v129
    %v132 = vsel %vm130, %v129, %v127
    %v133 = vmul.f32 %v131, %v110
    %v134 = vmul.f32 %v132, %v114
    %135 = vrot.lane.b32.xlu0 %v89, 16
    %v136 = vpop.permute.xlu0 %135
    %137 = vrot.lane.b32.xlu0 %v90, 16
    %v138 = vpop.permute.xlu0 %137
    %v139 = vsel %vm121, %v136, %v138
    %v140 = vsel %vm121, %v138, %v136
    %v141 = vmul.f32 %v140, %v97
    %v142 = vmul.f32 %v139, %v101
    %143 = vrot.lane.b32.xlu0 %v89, 112
    %v144 = vpop.permute.xlu0 %143
    %145 = vrot.lane.b32.xlu0 %v90, 112
    %v146 = vpop.permute.xlu0 %145
    %v147 = vsel %vm130, %v144, %v146
    %v148 = vsel %vm130, %v146, %v144
    %v149 = vmul.f32 %v147, %v110
    %v150 = vmul.f32 %v148, %v114
    %v151 = vmul.f32 %v83, 2.0
    %v152 = vmul.f32 %v84, 2.0
    %v153 = vadd.f32 %v124, %v151
    %v154 = vadd.f32 %v125, %v152
    %v155 = vadd.f32 %v153, %v133
    %v156 = vadd.f32 %v154, %v134
    %v157 = vsub.f32 %v141, %v149
    %v158 = vsub.f32 %v142, %v150
    %v159 = vand.u32 2147483647, %v155
    %v160 = vand.u32 2147483647, %v156
    %v161 = vand.u32 2147483647, %v157
    %v162 = vand.u32 2147483647, %v158
    %v163 = vadd.f32 %v159, %v161
    %v164 = vadd.f32 %v160, %v162
    %165 = vst [vmem:[#allocation7] sm:$0xff] %v163
    %166 = vst [vmem:[#allocation7 + $0x8] sm:$0xff] %v164
    // Predicated region
    $region18: #{tpu_custom_call.1} parent=1 // pred_check
      _
    $region19: #{tpu_custom_call.1} parent=1 // pred_check_branch
      %168 = sbr.rel (0) target = $region21
    $region20: #{tpu_custom_call.1} parent=1 // pred_region
      %s170 = ssub.s32 256, 256
      %171 = vsyncadd [#allocation4], %s170
      %s173 = sshll.u32 [#allocation7], 4
      %s174 = int_to_ptr.vmem [resolvable:$true] %s173
      %176 = dma.vmem_to_hbm [thread:$0]  %s174, 256, %s2, [#allocation4]
    $region21: #{tpu_custom_call.1} parent=1 // pred_fallthru
      _
    // Predicated region
    $region22: #{tpu_custom_call.1} parent=1 // pred_check
      _
    $region23: #{tpu_custom_call.1} parent=1 // pred_check_branch
      %178 = sbr.rel (0) target = $region25
    $region24: #{tpu_custom_call.1} parent=1 // pred_region
      %179 = dma.done [#allocation4], 256
    $region25: #{tpu_custom_call.1} parent=1 // pred_fallthru
      _
    %180 = vsyncpa [#allocation3], 1
    %181 = vsyncpa [#allocation6], 1
    %182 = vsyncpa [#allocation4], 1

</llo_original>
